<compile_context>
chip_gen: v7x
topology: tpu7x:2x2x1
jax: 0.10.0
libtpu: 0.0.40
codegen_flags: <defaults>
</compile_context>

<pallas_src>
import functools

import jax
import jax.numpy as jnp
from jax.experimental import pallas as pl
from jax.experimental.pallas import tpu as pltpu


# ----------------------------------------------------------------------------
# Kernel bodies (specialized at trace time on the number of K blocks).
# ----------------------------------------------------------------------------
def _mlo_kernel_single_k(x_ref, w_ref, b_ref, o_ref):
    # x: (tm, H), w: (H, tn), b: (1, tn) f32, o: (tm, tn).
    acc = jnp.dot(x_ref[...], w_ref[...], preferred_element_type=jnp.float32)
    o_ref[...] = (acc + b_ref[...]).astype(o_ref.dtype)


def _mlo_kernel_multi_k(x_ref, w_ref, b_ref, o_ref, acc_ref):
    # x: (tm, tk), w: (tk, tn), b: (1, tn) f32, o: (tm, tn), acc: (tm, tn) f32.
    k = pl.program_id(2)

    @pl.when(k == 0)
    def _init():
        acc_ref[...] = jnp.zeros_like(acc_ref)

    acc_ref[...] += jnp.dot(
        x_ref[...], w_ref[...], preferred_element_type=jnp.float32
    )

    @pl.when(k == pl.num_programs(2) - 1)
    def _store():
        o_ref[...] = (acc_ref[...] + b_ref[...]).astype(o_ref.dtype)


# ----------------------------------------------------------------------------
# Parameter prep (hoisted out of the per-call forward; params are static).
# ----------------------------------------------------------------------------
def prepare_modified_weight_bias(wd, bd, we, be, *, compute_dtype=jnp.bfloat16):
    """One-time parameter prep.

    wd: (I, H), bd: (I,), we: (A, H), be: (A,)
    Returns (wT (H, N) in compute_dtype, bias_row (1, N) f32) with N = I + A.
    """
    w = jnp.concatenate([wd, we], axis=0)                 # (N, H)
    b = jnp.concatenate([bd, be], axis=0)                 # (N,)
    wT = w.T.astype(compute_dtype)                        # (H, N)
    b_row = b[None, :].astype(jnp.float32)                # (1, N)
    return wT, b_row


# ----------------------------------------------------------------------------
# Tile selection helpers.
# ----------------------------------------------------------------------------
def _pick_tk(h, tk_max):
    """Reduction tile.  Full H if it fits; else the largest multiple of 128
    that divides H and is <= tk_max.  (K tiles must be multiples of 128 or the
    full H to satisfy the (8,128) layout rule, and must divide H exactly so no
    garbage enters the reduction.)"""
    if h <= tk_max:
        return h
    t = (tk_max // 128) * 128
    while t >= 128:
        if h % t == 0:
            return t
        t -= 128
    # No 128-multiple divisor <= tk_max: fall back to a single K block.
    # Rare for transformer hidden sizes; may need a larger vmem_limit_mb.
    return h


# ----------------------------------------------------------------------------
# Forward.
# ----------------------------------------------------------------------------
@functools.partial(
    jax.jit,
    static_argnames=("tm_max", "tn_max", "tk_max", "vmem_limit_mb"),
)
def modify_linear_output_single_forward(
    hidden_states, wT, b_row, *,
    tm_max=512, tn_max=512, tk_max=2048, vmem_limit_mb=40,
):
    """Forward of ModifyLinearOutput_single with pre-prepared weights.

    hidden_states: (B, S, H)
    wT:            (H, N)   transposed [linear.weight; extra_output.weight]
    b_row:         (1, N)   f32 bias row
    returns:       (B, S, N) in hidden_states.dtype
    """
    B, S, H = hidden_states.shape
    Hw, N = wT.shape
    assert Hw == H, (Hw, H)
    out_dtype = hidden_states.dtype

    M = B * S
    # Cast activations once to the compute dtype (bf16 default -> halves x DMA
    # bytes and feeds the MXU at native rate; accumulation stays f32).
    x2d = hidden_states.reshape(M, H).astype(wT.dtype)

    # --- tile selection ------------------------------------------------------
    itemsize = jnp.dtype(wT.dtype).itemsize
    quantum = 16 if itemsize < 4 else 8          # bf16 packs 2 rows / sublane

    if M <= tm_max:
        tm = M                                   # full extent -> always legal
    else:
        tm = max(quantum, (tm_max // quantum) * quantum)
    if N <= tn_max:
        tn = N                                   # full extent -> always legal
    else:
        tn = max(128, (tn_max // 128) * 128)
    tk = _pick_tk(H, tk_max)

    gM = pl.cdiv(M, tm)
    gN = pl.cdiv(N, tn)
    gK = pl.cdiv(H, tk)                          # tk divides H (or tk == H)

    # --- grid ordering -------------------------------------------------------
    x_bytes = M * H * itemsize
    w_bytes = H * N * itemsize
    if gN == 1:
        n_outer = False                          # keep outer parallel axis > 1
    elif gM == 1:
        n_outer = True
    elif gK == 1:
        # With a single K block, the operand whose block index is constant
        # across the inner loop stays resident; re-stream the cheaper one.
        n_outer = (w_bytes + gN * x_bytes) <= (x_bytes + gM * w_bytes)
    else:
        # With K tiling both operands re-stream regardless of order; put the
        # larger extent outermost so v7x's two TensorCores stay balanced.
        n_outer = gN >= gM

    # --- specs / kernel ------------------------------------------------------
    if gK == 1:
        kernel = _mlo_kernel_single_k
        scratch = ()
        semantics = ("parallel", "parallel")
        if n_outer:
            grid = (gN, gM)
            x_spec = pl.BlockSpec((tm, tk), lambda j, i: (i, 0))
            w_spec = pl.BlockSpec((tk, tn), lambda j, i: (0, j))
            b_spec = pl.BlockSpec((1, tn), lambda j, i: (0, j))
            o_spec = pl.BlockSpec((tm, tn), lambda j, i: (i, j))
        else:
            grid = (gM, gN)
            x_spec = pl.BlockSpec((tm, tk), lambda i, j: (i, 0))
            w_spec = pl.BlockSpec((tk, tn), lambda i, j: (0, j))
            b_spec = pl.BlockSpec((1, tn), lambda i, j: (0, j))
            o_spec = pl.BlockSpec((tm, tn), lambda i, j: (i, j))
    else:
        kernel = _mlo_kernel_multi_k
        scratch = (pltpu.VMEM((tm, tn), jnp.float32),)
        semantics = ("parallel", "parallel", "arbitrary")
        if n_outer:
            grid = (gN, gM, gK)
            x_spec = pl.BlockSpec((tm, tk), lambda j, i, k: (i, k))
            w_spec = pl.BlockSpec((tk, tn), lambda j, i, k: (k, j))
            b_spec = pl.BlockSpec((1, tn), lambda j, i, k: (0, j))
            o_spec = pl.BlockSpec((tm, tn), lambda j, i, k: (i, j))
        else:
            grid = (gM, gN, gK)
            x_spec = pl.BlockSpec((tm, tk), lambda i, j, k: (i, k))
            w_spec = pl.BlockSpec((tk, tn), lambda i, j, k: (k, j))
            b_spec = pl.BlockSpec((1, tn), lambda i, j, k: (0, j))
            o_spec = pl.BlockSpec((tm, tn), lambda i, j, k: (i, j))

    out2d = pl.pallas_call(
        kernel,
        out_shape=jax.ShapeDtypeStruct((M, N), out_dtype),
        grid_spec=pltpu.PrefetchScalarGridSpec(
            num_scalar_prefetch=0,
            grid=grid,
            in_specs=[x_spec, w_spec, b_spec],
            out_specs=o_spec,
            scratch_shapes=scratch,
        ),
        compiler_params=pltpu.CompilerParams(
            dimension_semantics=semantics,
            vmem_limit_bytes=vmem_limit_mb * 1024 * 1024,
        ),
    )(x2d, wT, b_row)

    return out2d.reshape(B, S, N)


# ----------------------------------------------------------------------------
# Self-test.
# ----------------------------------------------------------------------------
if __name__ == "__main__":
    # Small shapes implied by the module: (batch, seq, hidden) activations,
    # linear: hidden -> intermediate, extra_output: hidden -> add_neuron_num.
    B, S, H = 2, 8, 32
    I = 64                 # intermediate_size (> hidden_size)
    A = 1                  # add_neuron_num

    key = jax.random.PRNGKey(0)
    ks = jax.random.split(key, 10)

    hidden_states = jax.random.normal(ks[0], (B, S, H), dtype=jnp.float32)
    wd = jax.random.uniform(ks[1], (I, H), jnp.float32, -1.0, 1.0) / jnp.sqrt(H)
    bd = jax.random.uniform(ks[2], (I,), jnp.float32, -1.0, 1.0) / jnp.sqrt(H)
    we = jax.random.uniform(ks[3], (A, H), jnp.float32, -1.0, 1.0) / jnp.sqrt(H)
    be = jax.random.uniform(ks[4], (A,), jnp.float32, -1.0, 1.0) / jnp.sqrt(H)

    # Plain-JAX reference (highest precision so the reference itself is exact).
    w_full = jnp.concatenate([wd, we], axis=0)
    b_full = jnp.concatenate([bd, be], axis=0)
    ref = jnp.matmul(hidden_states, w_full.T,
                     precision=jax.lax.Precision.HIGHEST) + b_full

    # 1) Default bf16 compute path (f32 MXU accumulation, relaxed tolerance).
    wT_bf, brow = prepare_modified_weight_bias(wd, bd, we, be)
    out_bf = modify_linear_output_single_forward(hidden_states, wT_bf, brow)
    out_bf = jax.block_until_ready(out_bf)
    assert out_bf.shape == (B, S, I + A), out_bf.shape
    assert out_bf.dtype == hidden_states.dtype, out_bf.dtype
    err_bf = float(jnp.max(jnp.abs(out_bf - ref)))
    assert err_bf < 3e-2, err_bf

    # 2) Exact f32 path (tight tolerance) -- single-K specialized kernel.
    wT_f32, brow_f32 = prepare_modified_weight_bias(
        wd, bd, we, be, compute_dtype=jnp.float32
    )
    out_f32 = modify_linear_output_single_forward(hidden_states, wT_f32, brow_f32)
    out_f32 = jax.block_until_ready(out_f32)
    err_f32 = float(jnp.max(jnp.abs(out_f32 - ref)))
    assert err_f32 < 1e-5, err_f32

    # 3) Multi-K (accumulator) path: H=256 with tk_max=128 -> 2 reduction steps.
    H2 = 256
    hs2 = jax.random.normal(ks[5], (B, S, H2), dtype=jnp.float32)
    wd2 = jax.random.uniform(ks[6], (I, H2), jnp.float32, -1.0, 1.0) / jnp.sqrt(H2)
    bd2 = jax.random.uniform(ks[7], (I,), jnp.float32, -1.0, 1.0) / jnp.sqrt(H2)
    we2 = jax.random.uniform(ks[8], (A, H2), jnp.float32, -1.0, 1.0) / jnp.sqrt(H2)
    be2 = jax.random.uniform(ks[9], (A,), jnp.float32, -1.0, 1.0) / jnp.sqrt(H2)
    w2 = jnp.concatenate([wd2, we2], axis=0)
    b2 = jnp.concatenate([bd2, be2], axis=0)
    ref2 = jnp.matmul(hs2, w2.T, precision=jax.lax.Precision.HIGHEST) + b2
    wT2, brow2 = prepare_modified_weight_bias(
        wd2, bd2, we2, be2, compute_dtype=jnp.float32
    )
    out2 = modify_linear_output_single_forward(hs2, wT2, brow2, tk_max=128)
    out2 = jax.block_until_ready(out2)
    assert out2.shape == (B, S, I + A), out2.shape
    err2 = float(jnp.max(jnp.abs(out2 - ref2)))
    assert err2 < 1e-4, err2

    print("KERNEL_OK")
</pallas_src>

<mosaic_0001>
module attributes {stable_mosaic.version = 11 : i64} {
  func.func @_mlo_kernel_single_k(%arg0: i32, %arg1: i32, %arg2: memref<16x32xbf16, #tpu.memory_space<vmem>>, %arg3: memref<32x65xbf16, #tpu.memory_space<vmem>>, %arg4: memref<1x65xf32, #tpu.memory_space<vmem>>, %arg5: memref<16x65xf32, #tpu.memory_space<vmem>>) attributes {dimension_semantics = [#tpu.dimension_semantics<parallel>, #tpu.dimension_semantics<parallel>], iteration_bounds = array<i64: 1, 1>, scalar_prefetch = 0 : i64, scratch_operands = 0 : i64, tpu.core_type = #tpu.core_type<tc>, window_params = [{transform_indices = @transform_0, window_bounds = array<i64: 16, 32>}, {transform_indices = @transform_1, window_bounds = array<i64: 32, 65>}, {transform_indices = @transform_2, window_bounds = array<i64: 1, 65>}, {transform_indices = @transform_3, window_bounds = array<i64: 16, 65>}]} {
    %c0 = arith.constant 0 : index
    %c0_0 = arith.constant 0 : index
    %0 = vector.load %arg2[%c0, %c0_0] : memref<16x32xbf16, #tpu.memory_space<vmem>>, vector<16x32xbf16>
    %c0_1 = arith.constant 0 : index
    %c0_2 = arith.constant 0 : index
    %1 = vector.load %arg3[%c0_1, %c0_2] : memref<32x65xbf16, #tpu.memory_space<vmem>>, vector<32x65xbf16>
    %cst = arith.constant dense<0.000000e+00> : vector<16x65xf32>
    %2 = tpu.matmul %0, %1, %cst {dimension_numbers = #tpu.dot_dimension_numbers<[1], [0], [0], [1], [0, 0, 1, 1], [], []>} : vector<16x32xbf16>, vector<32x65xbf16>, vector<16x65xf32> -> vector<16x65xf32>
    %c0_3 = arith.constant 0 : index
    %c0_4 = arith.constant 0 : index
    %3 = vector.load %arg4[%c0_3, %c0_4] : memref<1x65xf32, #tpu.memory_space<vmem>>, vector<1x65xf32>
    %4 = vector.broadcast %3 : vector<1x65xf32> to vector<16x65xf32>
    %5 = arith.addf %2, %4 : vector<16x65xf32>
    %c0_5 = arith.constant 0 : index
    %c0_6 = arith.constant 0 : index
    %6 = vector.load %arg5[%c0_5, %c0_6] : memref<16x65xf32, #tpu.memory_space<vmem>>, vector<16x65xf32>
    tpu.vector_store %arg5[%c0_5, %c0_6], %5 {strides = array<i32>} : memref<16x65xf32, #tpu.memory_space<vmem>>, vector<16x65xf32>,
    return
  }
  func.func @transform_0(%arg0: i32, %arg1: i32) -> (i32, i32) {
    %c0_i32 = arith.constant 0 : i32
    %c0_i32_0 = arith.constant 0 : i32
    return %arg0, %c0_i32 : i32, i32
  }
  func.func @transform_1(%arg0: i32, %arg1: i32) -> (i32, i32) {
    %c0_i32 = arith.constant 0 : i32
    %c0_i32_0 = arith.constant 0 : i32
    return %c0_i32, %arg1 : i32, i32
  }
  func.func @transform_2(%arg0: i32, %arg1: i32) -> (i32, i32) {
    %c0_i32 = arith.constant 0 : i32
    %c0_i32_0 = arith.constant 0 : i32
    return %c0_i32, %arg1 : i32, i32
  }
  func.func @transform_3(%arg0: i32, %arg1: i32) -> (i32, i32) {
    %c0_i32 = arith.constant 0 : i32
    return %arg0, %arg1 : i32, i32
  }
}

</mosaic_0001>

<llo_original>
// kernel: modify_linear_output_single_forward.1
$region0: #{modify_linear_output_single_forward.1}
  #allocation0 [shape = 'u32[]', space=smem, size = 0x4, offset = 0x4, fixed_abs, tag = 'smem constant byte address 0x4 - core index']
  #allocation1 [shape = 'u32[144,128]{1,0:T(1,128)}', space=vmem, size = 0x12000, scoped, tag = 'internal scratch']
  %s0 = inlined_call_operand.vmem [shape: bf16[16,32], index: 0, kind: input, shape index: {}]
  %s1 = inlined_call_operand.vmem [shape: bf16[32,65], index: 1, kind: input, shape index: {}]
  %s2 = inlined_call_operand.vmem [shape: f32[1,65], index: 2, kind: input, shape index: {}]
  %s3 = inlined_call_operand.hbm [shape: f32[16,65], index: 3, kind: output, shape index: {}]
  %s4 = sld [smem:[#allocation0]]
  $region22: #{modify_linear_output_single_forward.1} parent=0
    _
  %s6 = ssub.s32 1, %s4
  %s7 = scalar_select 0, %s6, %s4
  $region1: #{modify_linear_output_single_forward.1} parent=0
    #allocation2 [shape = 'u8[8192]{0}', space=vmem, size = 0x2000, scoped, tag = 'output window, operand 0, single buffered']
    #allocation3 [shape = 's32[1]{0}', space=sflag, size = 0x4, scoped, tag = 'scoped memory for modify_linear_output_single_forward.1']
    %8 = vsyncpa [#allocation3], 0
    // Predicated region
    $region2: #{modify_linear_output_single_forward.1} parent=1 // pred_check
      _
    $region3: #{modify_linear_output_single_forward.1} parent=1 // pred_check_branch
      %10 = sbr.rel (0) target = $region5
    $region4: #{modify_linear_output_single_forward.1} parent=1 // pred_region
      _
    $region5: #{modify_linear_output_single_forward.1} parent=1 // pred_fallthru
      _
    // Predicated region
    $region6: #{modify_linear_output_single_forward.1} parent=1 // pred_check
      _
    $region7: #{modify_linear_output_single_forward.1} parent=1 // pred_check_branch
      %12 = sbr.rel (0) target = $region9
    $region8: #{modify_linear_output_single_forward.1} parent=1 // pred_region
      _
    $region9: #{modify_linear_output_single_forward.1} parent=1 // pred_fallthru
      _
    // Predicated region
    $region10: #{modify_linear_output_single_forward.1} parent=1 // pred_check
      _
    $region11: #{modify_linear_output_single_forward.1} parent=1 // pred_check_branch
      %14 = sbr.rel (0) target = $region13
    $region12: #{modify_linear_output_single_forward.1} parent=1 // pred_region
      _
    $region13: #{modify_linear_output_single_forward.1} parent=1 // pred_fallthru
      _
    %v16 = vld [vmem:[%s0] sm:$0xf]
    %v17 = vld [vmem:[%s0 + $0x4] sm:$0xf]
    %v18 = vld [vmem:[%s1] sm:$0xf]
    %v19 = vld [vmem:[%s1 + $0x4] sm:$0xf]
    %v20 = vld [vmem:[%s1 + $0x8] sm:$0xf]
    %v21 = vld [vmem:[%s1 + $0xc] sm:$0xf]
    %v22 = vld [vmem:[%s2] sm:$0x1]
    %v24 = vlaneseq
    %v25 = vshrl.u32 %v24, 7
    %v26 = vsub.s32 0, %v25
    %v27 = vrot.slane %v22, %v26
    %v31 = vunpack.c.l.b16 %v16
    %v32 = vunpack.c.l.b16 %v17
    %v33 = vpack.c.b16 %v32, %v31
    %v38 = vunpack.c.l.b16 %v18
    %v39 = vunpack.c.l.b16 %v19
    %v40 = vunpack.c.l.b16 %v20
    %v41 = vunpack.c.l.b16 %v21
    %v42 = vpack.c.b16 %v39, %v38
    %v43 = vpack.c.b16 %v41, %v40
    %vm46 = vcmask 261120
    %v48 = vsel %vm46, %v33, 0
    %50 = vmatprep.subr.bf16.mxu0 0
    %51 = vmatpush1.bf16.msra.mxu0 %v42
    %52 = vmatprep.subr.bf16.mxu0 0
    %53 = vmatpush1.bf16.msra.mxu0 %v43
    %54 = vmatprep.subr.bf16.mxu0 0
    %55 = vmatpush1.bf16.msra.mxu0 0
    %56 = vmatprep.subr.bf16.mxu0 0
    %57 = vmatpush1.bf16.msra.mxu0 0
    %58 = vmatprep.subr.bf16.mxu0 0
    %59 = vmatpush1.bf16.msra.mxu0 0
    %60 = vmatprep.subr.bf16.mxu0 0
    %61 = vmatpush1.bf16.msra.mxu0 0
    %62 = vmatprep.subr.bf16.mxu0 0
    %63 = vmatpush1.bf16.msra.mxu0 0
    %64 = vmatprep.subr.bf16.mxu0 0
    %65 = vmatpush1.bf16.msra.mxu0 0
    %66 = vmatprep.subr.bf16.mxu0 0
    %67 = vmatpush1.bf16.msra.mxu0 0
    %68 = vmatprep.subr.bf16.mxu0 0
    %69 = vmatpush1.bf16.msra.mxu0 0
    %70 = vmatprep.subr.bf16.mxu0 0
    %71 = vmatpush1.bf16.msra.mxu0 0
    %72 = vmatprep.subr.bf16.mxu0 0
    %73 = vmatpush1.bf16.msra.mxu0 0
    %74 = vmatprep.subr.bf16.mxu0 0
    %75 = vmatpush1.bf16.msra.mxu0 0
    %76 = vmatprep.subr.bf16.mxu0 0
    %77 = vmatpush1.bf16.msra.mxu0 0
    %78 = vmatprep.subr.bf16.mxu0 0
    %79 = vmatpush1.bf16.msra.mxu0 0
    %80 = vmatprep.subr.bf16.mxu0 0
    %81 = vmatpush1.bf16.msra.mxu0 0
    %82 = vmatprep.mubr.bf16.mxu0 0
    %83 = vmatmul.mubr.bf16.gmra.mrb[0].mxu0 %v48
    %v84 = vpop.f32.mrb[0].mxu0
    %v85 = vadd.f32 %v27, %v84
    %v86 = vpop.f32.mrb[0].mxu0
    %v87 = vpop.f32.mrb[0].mxu0
    %v88 = vadd.f32 %v27, %v87
    %v89 = vpop.f32.mrb[0].mxu0
    %90 = vdwg.mxu0
    %vm91 = vcmask 531456
    %92 = vst.msk [vmem:[#allocation2] sm:$0xff] %vm91, %v85
    %93 = vst.msk [vmem:[#allocation2 + $0x8] sm:$0xff] %vm91, %v88
    // Predicated region
    $region14: #{modify_linear_output_single_forward.1} parent=1 // pred_check
      _
    $region15: #{modify_linear_output_single_forward.1} parent=1 // pred_check_branch
      %95 = sbr.rel (0) target = $region17
    $region16: #{modify_linear_output_single_forward.1} parent=1 // pred_region
      %s97 = ssub.s32 256, 256
      %98 = vsyncadd [#allocation3], %s97
      %s99 = sshll.u32 [#allocation2], 4
      %s100 = int_to_ptr.vmem [resolvable:$true] %s99
      %105 = dma.vmem_to_hbm [thread:$0]  %s100, 256, %s3, [#allocation3], 128, 128, 8
    $region17: #{modify_linear_output_single_forward.1} parent=1 // pred_fallthru
      _
    // Predicated region
    $region18: #{modify_linear_output_single_forward.1} parent=1 // pred_check
      _
    $region19: #{modify_linear_output_single_forward.1} parent=1 // pred_check_branch
      %107 = sbr.rel (0) target = $region21
    $region20: #{modify_linear_output_single_forward.1} parent=1 // pred_region
      %108 = dma.done [#allocation3], 256
    $region21: #{modify_linear_output_single_forward.1} parent=1 // pred_fallthru
      _
    %109 = vsyncpa [#allocation3], 1

</llo_original>
